<compile_context>
chip_gen: v7x
topology: tpu7x:2x2x1
jax: 0.10.0
libtpu: 0.0.40
codegen_flags: <defaults>
</compile_context>

<pallas_src>
import functools

import jax
import jax.numpy as jnp
from jax import lax
from jax.experimental import pallas as pl
from jax.experimental.pallas import tpu as pltpu

EPS = 1e-5  # PyTorch nn.LayerNorm default eps


def _round_up(x, m):
    return ((x + m - 1) // m) * m


def _vmem_budget_bytes():
    """Per-generation VMEM budget (v7x has 64 MiB per TensorCore vs 128 MiB on v5e/v6e)."""
    phys = 64 << 20
    try:
        phys = int(getattr(pltpu.get_tpu_info(), "vmem_capacity_bytes", phys))
    except Exception:  # no TPU backend / query unavailable -> conservative default
        pass
    return max(16 << 20, min(phys * 3 // 4, 96 << 20))


def _choose_batch_tiling(batch, row_bytes, resident_bytes, vmem_budget):
    """Pick (batch tile TB, padded batch B_pad).

    TB is a multiple of 8 (full sublane tiles), sized so per-step blocks + in-kernel
    temporaries + resident weights fit the per-generation VMEM budget, capped at 1024
    rows, and small enough to leave >= 2 grid steps whenever the (8-padded) batch
    allows it (DMA pipelining everywhere; v7x megacore sharding of the batch axis).
    The batch is padded up to a multiple of TB; padded rows are discarded by the
    wrapper (zero rows normalize to finite values, no NaNs).
    """
    b8 = _round_up(max(batch, 1), 8)
    avail = max(vmem_budget - resident_bytes, 8 * row_bytes)
    tb = (avail // row_bytes) // 8 * 8
    tb = int(max(8, min(tb, 1024, b8)))
    if b8 >= 16:
        tb = max(8, min(tb, (b8 // 2) // 8 * 8))  # guarantee >= 2 grid steps
    b_pad = _round_up(b8, tb)
    return tb, b_pad


# ----------------------------------------------------------------------------
# Kernels
# ----------------------------------------------------------------------------
def _blockdiag_kernel(x_ref, g_ref, be_ref, w_ref, bias_ref, o_ref, *, seq_len):
    """Primary path: LN + block-diagonal Linear as one lane-aligned dot.

    Block shapes:
      x_ref    : (TB, seq_len)            un-padded input rows
      g_ref    : (1, seq_len)             LayerNorm gamma
      be_ref   : (1, seq_len)             LayerNorm beta
      w_ref    : (seq_len, p_num*d_model) block-diagonal expanded weight (resident)
      bias_ref : (1, p_num*d_model)       bias tiled per patch (resident)
      o_ref    : (TB, p_num*d_model)      lane-dense output slab
    """
    x = x_ref[...].astype(jnp.float32)                              # (TB, seq_len)
    inv_n = 1.0 / float(seq_len)
    mean = jnp.sum(x, axis=-1, keepdims=True) * inv_n
    c = x - mean
    var = jnp.maximum(jnp.sum(c * c, axis=-1, keepdims=True) * inv_n, 0.0)
    xn = c * lax.rsqrt(var + EPS) * g_ref[...] + be_ref[...]        # (TB, seq_len)
    acc = jnp.dot(xn, w_ref[...], preferred_element_type=jnp.float32) + bias_ref[...]
    o_ref[...] = acc.astype(o_ref.dtype)


def _patch_kernel(x_ref, g_ref, be_ref, w_ref, bias_ref, o_ref, *,
                  seq_len, patch_len, d_model, pad, merge_output):
    """Fallback path (W_big too big to keep resident): per-patch dot with tiny W^T.

    x/gamma/beta are zero-padded to l_pad = seq_len + pad in the wrapper; gamma/beta
    are zero in the padded columns so those columns normalize to exactly 0.0 (matching
    torch.cat((norm(x), zeros), dim=1)); LN statistics are corrected to cover only the
    original seq_len columns.
    """
    x = x_ref[...].astype(jnp.float32)                              # (TB, l_pad)
    tb, l_pad = x.shape
    p_num = l_pad // patch_len
    inv_n = 1.0 / float(seq_len)
    mean = jnp.sum(x, axis=-1, keepdims=True) * inv_n
    c = x - mean
    sq = jnp.sum(c * c, axis=-1, keepdims=True)
    if pad:
        sq = sq - float(pad) * mean * mean        # padded columns contributed mean^2
    var = jnp.maximum(sq * inv_n, 0.0)
    xn = c * lax.rsqrt(var + EPS) * g_ref[...] + be_ref[...]
    patches = xn.reshape(tb * p_num, patch_len)
    acc = jnp.dot(patches, w_ref[...], preferred_element_type=jnp.float32) + bias_ref[...]
    if merge_output:
        o_ref[...] = acc.reshape(tb, p_num * d_model).astype(o_ref.dtype)
    else:
        o_ref[...] = acc.astype(o_ref.dtype)      # lane-dense (TB*p_num, d_model) store


# ----------------------------------------------------------------------------
# Wrapper
# ----------------------------------------------------------------------------
def power_embedding(x, gamma, beta, weight, bias, *, patch_len,
                    out_dtype=None, prefer_blockdiag=None, interpret=False):
    """Pallas forward pass of PowerEmbedding.

    x      : (B, seq_len)  float32 or bfloat16
    gamma  : (seq_len,)    LayerNorm weight
    beta   : (seq_len,)    LayerNorm bias
    weight : (d_model, patch_len)  nn.Linear weight (PyTorch layout)
    bias   : (d_model,)
    returns (B, ceil(seq_len / patch_len), d_model) in out_dtype (default: x.dtype)
    """
    B, seq_len = x.shape
    d_model = weight.shape[0]
    pad = (patch_len - seq_len % patch_len) % patch_len
    l_pad = seq_len + pad
    p_num = l_pad // patch_len
    out_cols = p_num * d_model
    out_dtype = jnp.dtype(x.dtype if out_dtype is None else out_dtype)
    in_item = jnp.dtype(x.dtype).itemsize
    out_item = out_dtype.itemsize

    vmem_budget = _vmem_budget_bytes()
    compiler_params = pltpu.CompilerParams(
        dimension_semantics=("parallel",),        # batch grid axis -> v7x megacore
        vmem_limit_bytes=vmem_budget)

    # Resident-operand VMEM estimates ((8,128)-padded, double-buffered).
    gb_resident = 2 * 2 * 8 * _round_up(seq_len + pad, 128) * 4     # gamma + beta
    w_big_vmem = 2 * _round_up(seq_len, 8) * _round_up(out_cols, 128) * 4

    if prefer_blockdiag is None:
        use_blockdiag = w_big_vmem <= min(vmem_budget // 4, 16 << 20)
    else:
        use_blockdiag = bool(prefer_blockdiag)

    if use_blockdiag:
        # Block-diagonal expanded weight: W_big[p*patch_len + k, p*d_model + d] = W[d, k].T.
        # Dropping rows >= seq_len folds the zero-padding of the last patch into the
        # weight, so x itself is never padded (no extra wrapper-side HBM pass).
        w_t = weight.T.astype(jnp.float32)                           # (patch_len, d_model)
        w_big = jnp.kron(jnp.eye(p_num, dtype=jnp.float32), w_t)[:seq_len]
        bias_big = jnp.tile(bias.astype(jnp.float32), p_num).reshape(1, out_cols)
        g2 = gamma.reshape(1, seq_len).astype(jnp.float32)
        b2 = beta.reshape(1, seq_len).astype(jnp.float32)

        resident = w_big_vmem + gb_resident + 2 * 8 * _round_up(out_cols, 128) * 4
        row_bytes = (2 * seq_len * in_item         # double-buffered x block
                     + 2 * out_cols * out_item     # double-buffered out block
                     + 3 * seq_len * 4             # x_f32 / centered / xn temps
                     + 2 * out_cols * 4)           # f32 acc + store cast
        tb, b_pad = _choose_batch_tiling(B, row_bytes, resident, vmem_budget)
        x_in = x if b_pad == B else jnp.pad(x, ((0, b_pad - B), (0, 0)))

        out_flat = pl.pallas_call(
            functools.partial(_blockdiag_kernel, seq_len=seq_len),
            out_shape=jax.ShapeDtypeStruct((b_pad, out_cols), out_dtype),
            grid=(b_pad // tb,),
            in_specs=[
                pl.BlockSpec((tb, seq_len), lambda i: (i, 0)),          # x (batch tile)
                pl.BlockSpec((1, seq_len), lambda i: (0, 0)),           # gamma (resident)
                pl.BlockSpec((1, seq_len), lambda i: (0, 0)),           # beta  (resident)
                pl.BlockSpec((seq_len, out_cols), lambda i: (0, 0)),    # W_big (resident)
                pl.BlockSpec((1, out_cols), lambda i: (0, 0)),          # bias  (resident)
            ],
            out_specs=pl.BlockSpec((tb, out_cols), lambda i: (i, 0)),
            compiler_params=compiler_params,
            interpret=interpret,
        )(x_in, g2, b2, w_big, bias_big)
        out_flat = out_flat if b_pad == B else out_flat[:B]
        # Row-major free reshape: (B, p_num*d_model) -> (B, p_num, d_model).
        return out_flat.reshape(B, p_num, d_model)

    # --------------------------- fallback path --------------------------------
    merge_output = (d_model % 128 != 0)            # keep lane-dense slab for small d_model
    w_t = weight.T.astype(jnp.float32)             # (patch_len, d_model), resident & tiny
    bias2 = bias.reshape(1, d_model).astype(jnp.float32)

    resident = (2 * _round_up(patch_len, 8) * _round_up(d_model, 128) * 4
                + gb_resident + 2 * 8 * _round_up(d_model, 128) * 4)
    row_bytes = (2 * l_pad * in_item + 2 * out_cols * out_item
                 + 3 * l_pad * 4 + 2 * out_cols * 4
                 + p_num * 128 * 4)                # lane-padded patches intermediate
    tb, b_pad = _choose_batch_tiling(B, row_bytes, resident, vmem_budget)

    if pad or b_pad != B:
        x_in = jnp.pad(x, ((0, b_pad - B), (0, pad)))
    else:
        x_in = x
    g_in = jnp.pad(gamma, (0, pad)) if pad else gamma
    b_in = jnp.pad(beta, (0, pad)) if pad else beta
    g2 = g_in.reshape(1, l_pad).astype(jnp.float32)
    b2 = b_in.reshape(1, l_pad).astype(jnp.float32)

    kernel = functools.partial(_patch_kernel, seq_len=seq_len, patch_len=patch_len,
                               d_model=d_model, pad=pad, merge_output=merge_output)
    if merge_output:
        out_shape = jax.ShapeDtypeStruct((b_pad, out_cols), out_dtype)
        out_spec = pl.BlockSpec((tb, out_cols), lambda i: (i, 0))
    else:
        out_shape = jax.ShapeDtypeStruct((b_pad * p_num, d_model), out_dtype)
        out_spec = pl.BlockSpec((tb * p_num, d_model), lambda i: (i, 0))

    out = pl.pallas_call(
        kernel,
        out_shape=out_shape,
        grid=(b_pad // tb,),
        in_specs=[
            pl.BlockSpec((tb, l_pad), lambda i: (i, 0)),                # x (batch tile)
            pl.BlockSpec((1, l_pad), lambda i: (0, 0)),                 # gamma (resident)
            pl.BlockSpec((1, l_pad), lambda i: (0, 0)),                 # beta  (resident)
            pl.BlockSpec((patch_len, d_model), lambda i: (0, 0)),       # W^T   (resident)
            pl.BlockSpec((1, d_model), lambda i: (0, 0)),               # bias  (resident)
        ],
        out_specs=out_spec,
        compiler_params=compiler_params,
        interpret=interpret,
    )(x_in, g2, b2, w_t, bias2)

    out = out.reshape(b_pad, p_num, d_model)
    return out if b_pad == B else out[:B]


# ----------------------------------------------------------------------------
# Pure-JAX reference mirroring the PyTorch forward exactly.
# ----------------------------------------------------------------------------
def reference(x, gamma, beta, weight, bias, *, patch_len):
    x = x.astype(jnp.float32)
    B, seq_len = x.shape
    mean = jnp.mean(x, axis=-1, keepdims=True)
    var = jnp.mean(jnp.square(x - mean), axis=-1, keepdims=True)
    xn = (x - mean) / jnp.sqrt(var + EPS) * gamma + beta
    pad = (patch_len - seq_len % patch_len) % patch_len
    if pad:
        xn = jnp.concatenate([xn, jnp.zeros((B, pad), xn.dtype)], axis=1)
    patches = xn.reshape(B, -1, patch_len)
    return patches @ weight.T + bias


if __name__ == "__main__":
    key = jax.random.PRNGKey(0)

    def make_case(k, B, seq_len, patch_len, d_model, dtype=jnp.float32):
        ks = jax.random.split(k, 5)
        x = jax.random.normal(ks[0], (B, seq_len), jnp.float32).astype(dtype)
        gamma = 1.0 + 0.1 * jax.random.normal(ks[1], (seq_len,), jnp.float32)
        beta = 0.1 * jax.random.normal(ks[2], (seq_len,), jnp.float32)
        weight = 0.1 * jax.random.normal(ks[3], (d_model, patch_len), jnp.float32)
        bias = 0.1 * jax.random.normal(ks[4], (d_model,), jnp.float32)
        return x, gamma, beta, weight, bias

    def check(tag, out, ref, atol, rtol):
        o = out.astype(jnp.float32)
        err = jnp.max(jnp.abs(o - ref))
        assert jnp.allclose(o, ref, atol=atol, rtol=rtol), f"{tag}: max abs err = {err}"

    patch_len = 4
    keys = jax.random.split(key, 4)

    # 1) Block-diag path, seq_len divisible by patch_len, f32 in/out.
    x, g, b, w, bb = make_case(keys[0], 2, 8, patch_len, 32)
    out = jax.block_until_ready(power_embedding(x, g, b, w, bb, patch_len=patch_len))
    ref = reference(x, g, b, w, bb, patch_len=patch_len)
    assert out.shape == (2, 2, 32), out.shape
    check("case1", out, ref, 2e-3, 2e-3)

    # 2) Block-diag path, seq_len NOT divisible (zero-pad folded into W_big).
    x2, g2, b2, w2, bb2 = make_case(keys[1], 2, 10, patch_len, 32)
    out2 = jax.block_until_ready(power_embedding(x2, g2, b2, w2, bb2, patch_len=patch_len))
    ref2 = reference(x2, g2, b2, w2, bb2, patch_len=patch_len)
    assert out2.shape == (2, 3, 32), out2.shape
    check("case2", out2, ref2, 2e-3, 2e-3)

    # 3) bf16 at the HBM boundary (bf16 in -> bf16 out; LN/dot stay f32 inside).
    xb = x.astype(jnp.bfloat16)
    out3 = jax.block_until_ready(power_embedding(xb, g, b, w, bb, patch_len=patch_len))
    ref3 = reference(xb.astype(jnp.float32), g, b, w, bb, patch_len=patch_len)
    assert out3.dtype == jnp.bfloat16, out3.dtype
    check("case3", out3, ref3, 2e-2, 2e-2)

    # 4) Batch padded + >= 2 grid steps (B=10 -> padded to 16, TB=8).
    x4, g4, b4, w4, bb4 = make_case(keys[2], 10, 8, patch_len, 32)
    out4 = jax.block_until_ready(power_embedding(x4, g4, b4, w4, bb4, patch_len=patch_len))
    ref4 = reference(x4, g4, b4, w4, bb4, patch_len=patch_len)
    assert out4.shape == (10, 2, 32), out4.shape
    check("case4", out4, ref4, 2e-3, 2e-3)

    # 5) Forced per-patch fallback, small d_model (slab output), with seq padding.
    out5 = jax.block_until_ready(
        power_embedding(x2, g2, b2, w2, bb2, patch_len=patch_len, prefer_blockdiag=False))
    check("case5", out5, ref2, 2e-3, 2e-3)

    # 6) Forced per-patch fallback, d_model=128 (lane-dense (B*p_num, d_model) store),
    #    odd batch exercising the batch-padding path.
    x6, g6, b6, w6, bb6 = make_case(keys[3], 3, 12, patch_len, 128)
    out6 = jax.block_until_ready(
        power_embedding(x6, g6, b6, w6, bb6, patch_len=patch_len, prefer_blockdiag=False))
    ref6 = reference(x6, g6, b6, w6, bb6, patch_len=patch_len)
    assert out6.shape == (3, 3, 128), out6.shape
    check("case6", out6, ref6, 2e-3, 2e-3)

    print("KERNEL_OK")
</pallas_src>

<mosaic_0001>
module attributes {stable_mosaic.version = 11 : i64} {
  func.func @_blockdiag_kernel(%arg0: i32, %arg1: memref<8x8xf32, #tpu.memory_space<vmem>>, %arg2: memref<1x8xf32, #tpu.memory_space<vmem>>, %arg3: memref<1x8xf32, #tpu.memory_space<vmem>>, %arg4: memref<8x64xf32, #tpu.memory_space<vmem>>, %arg5: memref<1x64xf32, #tpu.memory_space<vmem>>, %arg6: memref<8x64xf32, #tpu.memory_space<vmem>>) attributes {dimension_semantics = [#tpu.dimension_semantics<parallel>], iteration_bounds = array<i64: 1>, scalar_prefetch = 0 : i64, scratch_operands = 0 : i64, tpu.core_type = #tpu.core_type<tc>, window_params = [{transform_indices = @transform_0, window_bounds = array<i64: 8, 8>}, {pipeline_mode = #tpu.pipeline_mode<synchronous>, transform_indices = @transform_1, window_bounds = array<i64: 1, 8>}, {pipeline_mode = #tpu.pipeline_mode<synchronous>, transform_indices = @transform_2, window_bounds = array<i64: 1, 8>}, {pipeline_mode = #tpu.pipeline_mode<synchronous>, transform_indices = @transform_3, window_bounds = array<i64: 8, 64>}, {pipeline_mode = #tpu.pipeline_mode<synchronous>, transform_indices = @transform_4, window_bounds = array<i64: 1, 64>}, {transform_indices = @transform_5, window_bounds = array<i64: 8, 64>}]} {
    %c0 = arith.constant 0 : index
    %c0_0 = arith.constant 0 : index
    %0 = vector.load %arg1[%c0, %c0_0] : memref<8x8xf32, #tpu.memory_space<vmem>>, vector<8x8xf32>
    %cst = arith.constant dense<0.000000e+00> : vector<8xf32>
    %1 = vector.multi_reduction <add>, %0, %cst [1] : vector<8x8xf32> to vector<8xf32>
    %2 = vector.shape_cast %1 : vector<8xf32> to vector<8x1xf32>
    %cst_1 = arith.constant 1.250000e-01 : f32
    %3 = vector.broadcast %cst_1 : f32 to vector<8x1xf32>
    %4 = arith.mulf %2, %3 : vector<8x1xf32>
    %5 = vector.broadcast %4 : vector<8x1xf32> to vector<8x8xf32>
    %6 = arith.subf %0, %5 : vector<8x8xf32>
    %7 = arith.mulf %6, %6 : vector<8x8xf32>
    %cst_2 = arith.constant dense<0.000000e+00> : vector<8xf32>
    %8 = vector.multi_reduction <add>, %7, %cst_2 [1] : vector<8x8xf32> to vector<8xf32>
    %9 = vector.shape_cast %8 : vector<8xf32> to vector<8x1xf32>
    %cst_3 = arith.constant 1.250000e-01 : f32
    %10 = vector.broadcast %cst_3 : f32 to vector<8x1xf32>
    %11 = arith.mulf %9, %10 : vector<8x1xf32>
    %cst_4 = arith.constant 0.000000e+00 : f32
    %12 = vector.broadcast %cst_4 : f32 to vector<8x1xf32>
    %13 = arith.maximumf %11, %12 : vector<8x1xf32>
    %cst_5 = arith.constant 9.99999974E-6 : f32
    %14 = vector.broadcast %cst_5 : f32 to vector<8x1xf32>
    %15 = arith.addf %13, %14 : vector<8x1xf32>
    %16 = math.rsqrt %15 : vector<8x1xf32>
    %17 = vector.broadcast %16 : vector<8x1xf32> to vector<8x8xf32>
    %18 = arith.mulf %6, %17 : vector<8x8xf32>
    %c0_6 = arith.constant 0 : index
    %c0_7 = arith.constant 0 : index
    %19 = vector.load %arg2[%c0_6, %c0_7] : memref<1x8xf32, #tpu.memory_space<vmem>>, vector<1x8xf32>
    %20 = vector.broadcast %19 : vector<1x8xf32> to vector<8x8xf32>
    %21 = arith.mulf %18, %20 : vector<8x8xf32>
    %c0_8 = arith.constant 0 : index
    %c0_9 = arith.constant 0 : index
    %22 = vector.load %arg3[%c0_8, %c0_9] : memref<1x8xf32, #tpu.memory_space<vmem>>, vector<1x8xf32>
    %23 = vector.broadcast %22 : vector<1x8xf32> to vector<8x8xf32>
    %24 = arith.addf %21, %23 : vector<8x8xf32>
    %c0_10 = arith.constant 0 : index
    %c0_11 = arith.constant 0 : index
    %25 = vector.load %arg4[%c0_10, %c0_11] : memref<8x64xf32, #tpu.memory_space<vmem>>, vector<8x64xf32>
    %cst_12 = arith.constant dense<0.000000e+00> : vector<8x64xf32>
    %26 = tpu.matmul %24, %25, %cst_12 {dimension_numbers = #tpu.dot_dimension_numbers<[1], [0], [0], [1], [0, 0, 1, 1], [], []>} : vector<8x8xf32>, vector<8x64xf32>, vector<8x64xf32> -> vector<8x64xf32>
    %c0_13 = arith.constant 0 : index
    %c0_14 = arith.constant 0 : index
    %27 = vector.load %arg5[%c0_13, %c0_14] : memref<1x64xf32, #tpu.memory_space<vmem>>, vector<1x64xf32>
    %28 = vector.broadcast %27 : vector<1x64xf32> to vector<8x64xf32>
    %29 = arith.addf %26, %28 : vector<8x64xf32>
    %c0_15 = arith.constant 0 : index
    %c0_16 = arith.constant 0 : index
    %30 = vector.load %arg6[%c0_15, %c0_16] : memref<8x64xf32, #tpu.memory_space<vmem>>, vector<8x64xf32>
    tpu.vector_store %arg6[%c0_15, %c0_16], %29 {strides = array<i32>} : memref<8x64xf32, #tpu.memory_space<vmem>>, vector<8x64xf32>,
    return
  }
  func.func @transform_0(%arg0: i32) -> (i32, i32) {
    %c0_i32 = arith.constant 0 : i32
    %c0_i32_0 = arith.constant 0 : i32
    return %arg0, %c0_i32 : i32, i32
  }
  func.func @transform_1(%arg0: i32) -> (i32, i32) {
    %c0_i32 = arith.constant 0 : i32
    %c0_i32_0 = arith.constant 0 : i32
    %c0_i32_1 = arith.constant 0 : i32
    return %c0_i32, %c0_i32_0 : i32, i32
  }
  func.func @transform_2(%arg0: i32) -> (i32, i32) {
    %c0_i32 = arith.constant 0 : i32
    %c0_i32_0 = arith.constant 0 : i32
    %c0_i32_1 = arith.constant 0 : i32
    return %c0_i32, %c0_i32_0 : i32, i32
  }
  func.func @transform_3(%arg0: i32) -> (i32, i32) {
    %c0_i32 = arith.constant 0 : i32
    %c0_i32_0 = arith.constant 0 : i32
    %c0_i32_1 = arith.constant 0 : i32
    return %c0_i32, %c0_i32_0 : i32, i32
  }
  func.func @transform_4(%arg0: i32) -> (i32, i32) {
    %c0_i32 = arith.constant 0 : i32
    %c0_i32_0 = arith.constant 0 : i32
    %c0_i32_1 = arith.constant 0 : i32
    return %c0_i32, %c0_i32_0 : i32, i32
  }
  func.func @transform_5(%arg0: i32) -> (i32, i32) {
    %c0_i32 = arith.constant 0 : i32
    %c0_i32_0 = arith.constant 0 : i32
    return %arg0, %c0_i32 : i32, i32
  }
}

</mosaic_0001>

<llo_original>
// kernel: tpu_custom_call.1
$region0: #{tpu_custom_call.1}
  #allocation0 [shape = 'u32[]', space=smem, size = 0x4, offset = 0x4, fixed_abs, tag = 'smem constant byte address 0x4 - core index']
  #allocation1 [shape = 'u32[144,128]{1,0:T(1,128)}', space=vmem, size = 0x12000, scoped, tag = 'internal scratch']
  %s0 = inlined_call_operand.hbm [shape: f32[8,8], index: 0, kind: input, shape index: {}]
  %s1 = inlined_call_operand.vmem [shape: f32[1,8], index: 1, kind: input, shape index: {}]
  %s2 = inlined_call_operand.vmem [shape: f32[1,8], index: 2, kind: input, shape index: {}]
  %s3 = inlined_call_operand.vmem [shape: f32[8,64], index: 3, kind: input, shape index: {}]
  %s4 = inlined_call_operand.vmem [shape: f32[1,64], index: 4, kind: input, shape index: {}]
  %s5 = inlined_call_operand.hbm [shape: f32[8,64], index: 5, kind: output, shape index: {}]
  %s6 = sld [smem:[#allocation0]]
  $region34: #{tpu_custom_call.1} parent=0
    _
  %s8 = ssub.s32 1, %s6
  %s9 = scalar_select 0, %s8, %s6
  $region1: #{tpu_custom_call.1} parent=0
    #allocation2 [shape = 'u8[4096]{0}', space=vmem, size = 0x1000, scoped, tag = 'input window, operand 0, single buffered']
    #allocation3 [shape = 's32[1]{0}', space=sflag, size = 0x4, scoped, tag = 'scoped memory for tpu_custom_call.1']
    #allocation4 [shape = 's32[1]{0}', space=sflag, size = 0x4, scoped, tag = 'scoped memory for tpu_custom_call.1']
    #allocation5 [shape = 'u8[4096]{0}', space=vmem, size = 0x1000, scoped, tag = 'output window, operand 0, single buffered']
    %10 = vsyncpa [#allocation3], 0
    %11 = vsyncpa [#allocation4], 0
    // Predicated region
    $region2: #{tpu_custom_call.1} parent=1 // pred_check
      _
    $region3: #{tpu_custom_call.1} parent=1 // pred_check_branch
      %13 = sbr.rel (0) target = $region5
    $region4: #{tpu_custom_call.1} parent=1 // pred_region
      %s15 = ssub.s32 128, 128
      %16 = vsyncadd [#allocation3], %s15
      %s18 = sshll.u32 [#allocation2], 4
      %s19 = int_to_ptr.vmem [resolvable:$true] %s18
      %21 = dma.hbm_to_vmem [thread:$0]  %s0, 128, %s19, [#allocation3]
    $region5: #{tpu_custom_call.1} parent=1 // pred_fallthru
      _
    // Predicated region
    $region6: #{tpu_custom_call.1} parent=1 // pred_check
      _
    $region7: #{tpu_custom_call.1} parent=1 // pred_check_branch
      %23 = sbr.rel (0) target = $region9
    $region8: #{tpu_custom_call.1} parent=1 // pred_region
      _
    $region9: #{tpu_custom_call.1} parent=1 // pred_fallthru
      _
    // Predicated region
    $region10: #{tpu_custom_call.1} parent=1 // pred_check
      _
    $region11: #{tpu_custom_call.1} parent=1 // pred_check_branch
      %25 = sbr.rel (0) target = $region13
    $region12: #{tpu_custom_call.1} parent=1 // pred_region
      _
    $region13: #{tpu_custom_call.1} parent=1 // pred_fallthru
      _
    // Predicated region
    $region14: #{tpu_custom_call.1} parent=1 // pred_check
      _
    $region15: #{tpu_custom_call.1} parent=1 // pred_check_branch
      %27 = sbr.rel (0) target = $region17
    $region16: #{tpu_custom_call.1} parent=1 // pred_region
      _
    $region17: #{tpu_custom_call.1} parent=1 // pred_fallthru
      _
    // Predicated region
    $region18: #{tpu_custom_call.1} parent=1 // pred_check
      _
    $region19: #{tpu_custom_call.1} parent=1 // pred_check_branch
      %29 = sbr.rel (0) target = $region21
    $region20: #{tpu_custom_call.1} parent=1 // pred_region
      _
    $region21: #{tpu_custom_call.1} parent=1 // pred_fallthru
      _
    // Predicated region
    $region22: #{tpu_custom_call.1} parent=1 // pred_check
      _
    $region23: #{tpu_custom_call.1} parent=1 // pred_check_branch
      %31 = sbr.rel (0) target = $region25
    $region24: #{tpu_custom_call.1} parent=1 // pred_region
      %32 = dma.done [#allocation3], 128
    $region25: #{tpu_custom_call.1} parent=1 // pred_fallthru
      _
    %v33 = vld [vmem:[#allocation2] sm:$0xff]
    %vm34 = vcmask 64512
    %v35 = vsel %vm34, %v33, 0.0
    %36 = vadd.xlane.f32.xlu0 %v35
    %v37 = vpop.xlane.xlu0 %36
    %v38 = vmul.f32 %v37, 0.125
    %v39 = vsub.f32 %v33, %v38
    %v40 = vmul.f32 %v39, %v39
    %v41 = vsel %vm34, %v40, 0.0
    %42 = vadd.xlane.f32.xlu0 %v41
    %v43 = vpop.xlane.xlu0 %42
    %v44 = vmul.f32 %v43, 0.125
    %v45 = vmax.f32 %v44, 0.0
    %v46 = vadd.f32 %v45, 1e-05
    %v47 = vrsqrt.pop %v46
    %v48 = vmul.f32 %v39, %v47
    %v49 = vld [vmem:[%s1] sm:$0x1]
    %v51 = vlaneseq
    %v52 = vshrl.u32 %v51, 7
    %v53 = vsub.s32 0, %v52
    %v54 = vrot.slane %v49, %v53
    %v56 = vmul.f32 %v48, %v54
    %v57 = vld [vmem:[%s2] sm:$0x1]
    %v59 = vlaneseq
    %v60 = vshrl.u32 %v59, 7
    %v61 = vsub.s32 0, %v60
    %v62 = vrot.slane %v57, %v61
    %v64 = vadd.f32 %v56, %v62
    %v65 = vld [vmem:[%s3] sm:$0xff]
    %v66 = vld [vmem:[%s4] sm:$0x1]
    %v68 = vlaneseq
    %v69 = vshrl.u32 %v68, 7
    %v70 = vsub.s32 0, %v69
    %v71 = vrot.slane %v66, %v70
    %v74 = vsel %vm34, %v64, 0
    %76 = vmatprep.subr.mxu0 0.0
    %77 = vmatpush1.msra.mxu0 %v65
    %78 = vmatprep.subr.mxu0 0.0
    %79 = vmatpush1.msra.mxu0 0.0
    %80 = vmatprep.subr.mxu0 0.0
    %81 = vmatpush1.msra.mxu0 0.0
    %82 = vmatprep.subr.mxu0 0.0
    %83 = vmatpush1.msra.mxu0 0.0
    %84 = vmatprep.subr.mxu0 0.0
    %85 = vmatpush1.msra.mxu0 0.0
    %86 = vmatprep.subr.mxu0 0.0
    %87 = vmatpush1.msra.mxu0 0.0
    %88 = vmatprep.subr.mxu0 0.0
    %89 = vmatpush1.msra.mxu0 0.0
    %90 = vmatprep.subr.mxu0 0.0
    %91 = vmatpush1.msra.mxu0 0.0
    %92 = vmatprep.subr.mxu0 0.0
    %93 = vmatpush1.msra.mxu0 0.0
    %94 = vmatprep.subr.mxu0 0.0
    %95 = vmatpush1.msra.mxu0 0.0
    %96 = vmatprep.subr.mxu0 0.0
    %97 = vmatpush1.msra.mxu0 0.0
    %98 = vmatprep.subr.mxu0 0.0
    %99 = vmatpush1.msra.mxu0 0.0
    %100 = vmatprep.subr.mxu0 0.0
    %101 = vmatpush1.msra.mxu0 0.0
    %102 = vmatprep.subr.mxu0 0.0
    %103 = vmatpush1.msra.mxu0 0.0
    %104 = vmatprep.subr.mxu0 0.0
    %105 = vmatpush1.msra.mxu0 0.0
    %106 = vmatprep.subr.mxu0 0.0
    %107 = vmatpush1.msra.mxu0 0.0
    %108 = vmatprep.subr.mxu0 0.0
    %109 = vmatpush1.msra.mxu0 0.0
    %110 = vmatprep.subr.mxu0 0.0
    %111 = vmatpush1.msra.mxu0 0.0
    %112 = vmatprep.subr.mxu0 0.0
    %113 = vmatpush1.msra.mxu0 0.0
    %114 = vmatprep.subr.mxu0 0.0
    %115 = vmatpush1.msra.mxu0 0.0
    %116 = vmatprep.subr.mxu0 0.0
    %117 = vmatpush1.msra.mxu0 0.0
    %118 = vmatprep.subr.mxu0 0.0
    %119 = vmatpush1.msra.mxu0 0.0
    %120 = vmatprep.subr.mxu0 0.0
    %121 = vmatpush1.msra.mxu0 0.0
    %122 = vmatprep.subr.mxu0 0.0
    %123 = vmatpush1.msra.mxu0 0.0
    %124 = vmatprep.subr.mxu0 0.0
    %125 = vmatpush1.msra.mxu0 0.0
    %126 = vmatprep.subr.mxu0 0.0
    %127 = vmatpush1.msra.mxu0 0.0
    %128 = vmatprep.subr.mxu0 0.0
    %129 = vmatpush1.msra.mxu0 0.0
    %130 = vmatprep.subr.mxu0 0.0
    %131 = vmatpush1.msra.mxu0 0.0
    %132 = vmatprep.subr.mxu0 0.0
    %133 = vmatpush1.msra.mxu0 0.0
    %134 = vmatprep.subr.mxu0 0.0
    %135 = vmatpush1.msra.mxu0 0.0
    %136 = vmatprep.subr.mxu0 0.0
    %137 = vmatpush1.msra.mxu0 0.0
    %138 = vmatprep.subr.mxu0 0.0
    %139 = vmatpush1.msra.mxu0 0.0
    %140 = vmatprep.mubr.f32.mxu0 0.0
    %141 = vmatmul.mubr.f32.gmra.mrb[0].mxu0 %v74
    %v142 = vpop.f32.mrb[0].mxu0
    %v143 = vadd.f32 %v71, %v142
    %v144 = vpop.f32.mrb[0].mxu0
    %145 = vdwg.mxu0
    %vm146 = vcmask 523264
    %147 = vst.msk [vmem:[#allocation5] sm:$0xff] %vm146, %v143
    // Predicated region
    $region26: #{tpu_custom_call.1} parent=1 // pred_check
      _
    $region27: #{tpu_custom_call.1} parent=1 // pred_check_branch
      %149 = sbr.rel (0) target = $region29
    $region28: #{tpu_custom_call.1} parent=1 // pred_region
      %s151 = ssub.s32 128, 128
      %152 = vsyncadd [#allocation4], %s151
      %s154 = sshll.u32 [#allocation5], 4
      %s155 = int_to_ptr.vmem [resolvable:$true] %s154
      %157 = dma.vmem_to_hbm [thread:$0]  %s155, 128, %s5, [#allocation4]
    $region29: #{tpu_custom_call.1} parent=1 // pred_fallthru
      _
    // Predicated region
    $region30: #{tpu_custom_call.1} parent=1 // pred_check
      _
    $region31: #{tpu_custom_call.1} parent=1 // pred_check_branch
      %159 = sbr.rel (0) target = $region33
    $region32: #{tpu_custom_call.1} parent=1 // pred_region
      %160 = dma.done [#allocation4], 128
    $region33: #{tpu_custom_call.1} parent=1 // pred_fallthru
      _
    %161 = vsyncpa [#allocation3], 1
    %162 = vsyncpa [#allocation4], 1

</llo_original>
